<compile_context>
chip_gen: v7x
topology: tpu7x:2x2x1
jax: 0.10.0
libtpu: 0.0.40
codegen_flags: <defaults>
</compile_context>

<pallas_src>
import functools

import jax
import jax.numpy as jnp
from jax.experimental import pallas as pl
from jax.experimental.pallas import tpu as pltpu


def _round_up(n, m):
    return ((n + m - 1) // m) * m


# --------------------------------------------------------------------------
# Kernel
# --------------------------------------------------------------------------
def _value_net_kernel(x_ref, w1_ref, w23_ref, w4_ref, b_ref, out_ref):
    """One batch tile of the whole MLP. Weights/biases are VMEM-resident.

    x_ref  : [TB, S]      input tile (f32 or bf16, matches weight dtype)
    w1_ref : [S, P]       fc1 weight, hidden padded to P (multiple of 128)
    w23_ref: [2, P, P]    stacked fc2 / fc3 weights
    w4_ref : [1, P]       fc4 weight row, float32 (padded lanes are zero)
    b_ref  : [4, P]       stacked biases, float32 (row 3: b4 at lane 0)
    out_ref: [TB, 1]      output column (float32)
    """
    wdt = w1_ref.dtype  # compute dtype for MXU inputs; accumulation is f32

    x = x_ref[...].astype(wdt)

    h = jnp.dot(x, w1_ref[...], preferred_element_type=jnp.float32)
    h = jnp.maximum(h + b_ref[0:1, :], 0.0)                 # f32 bias/ReLU

    h = jnp.dot(h.astype(wdt), w23_ref[0], preferred_element_type=jnp.float32)
    h = jnp.maximum(h + b_ref[1:2, :], 0.0)

    h = jnp.dot(h.astype(wdt), w23_ref[1], preferred_element_type=jnp.float32)
    h = jnp.maximum(h + b_ref[2:3, :], 0.0)

    # fc4 has a single real output column: VPU multiply + XLU lane reduction
    # in f32 instead of a 3rd PxP MXU matmul (127/128 zero-padded waste).
    out = jnp.sum(h * w4_ref[...], axis=-1, keepdims=True) + b_ref[3:4, 0:1]
    out_ref[...] = out.astype(out_ref.dtype)


# --------------------------------------------------------------------------
# One-time parameter packing (do NOT call per forward)
# --------------------------------------------------------------------------
def prepare_value_net_params(params, dtype=jnp.bfloat16):
    """Transpose to [in, out], pad hidden to a multiple of 128, pack.

    Returns: w1 [S, P] (dtype), w23 [2, P, P] (dtype), w4 [1, P] (f32),
    bias [4, P] (f32, row 3 holds the fc4 bias scalar at lane 0).
    `dtype` is the MXU input dtype (bf16 default; accumulation stays f32).
    Note: bf16 weights also mean the input x is cast to bf16 by the wrapper,
    i.e. this flag controls activation precision too. All padding entries are
    zero, so results match the unpadded math exactly (ReLU(0)=0, zero weight
    columns contribute nothing).
    """
    w1 = jnp.asarray(params["fc1_w"], jnp.float32).T        # [state_dim, hidden]
    w2 = jnp.asarray(params["fc2_w"], jnp.float32).T        # [hidden, hidden]
    w3 = jnp.asarray(params["fc3_w"], jnp.float32).T        # [hidden, hidden]
    w4 = jnp.asarray(params["fc4_w"], jnp.float32)          # [1, hidden]
    b1 = jnp.asarray(params["fc1_b"], jnp.float32)
    b2 = jnp.asarray(params["fc2_b"], jnp.float32)
    b3 = jnp.asarray(params["fc3_b"], jnp.float32)
    b4 = jnp.asarray(params["fc4_b"], jnp.float32)           # [1]

    hidden = w1.shape[1]
    P = _round_up(hidden, 128)    # keep at 128-multiple; do NOT pad to 256

    def pad2(w):  # pad to [P, P]
        return jnp.pad(w, ((0, P - w.shape[0]), (0, P - w.shape[1])))

    w1p = jnp.pad(w1, ((0, 0), (0, P - hidden))).astype(dtype)        # [S, P]
    w23 = jnp.stack([pad2(w2), pad2(w3)]).astype(dtype)               # [2, P, P]
    w4row = jnp.pad(w4, ((0, 0), (0, P - hidden))).astype(jnp.float32)  # [1, P]

    bias = jnp.zeros((4, P), jnp.float32)
    bias = bias.at[0, :hidden].set(b1)
    bias = bias.at[1, :hidden].set(b2)
    bias = bias.at[2, :hidden].set(b3)
    bias = bias.at[3, 0].set(b4[0])

    return {"w1": w1p, "w23": w23, "w4": w4row, "bias": bias}


# --------------------------------------------------------------------------
# Forward wrapper
# --------------------------------------------------------------------------
@functools.partial(jax.jit, static_argnames=("tile_b",))
def value_net_forward(x, packed, *, tile_b=4096):
    """x: [B, state_dim]; packed: output of prepare_value_net_params.

    Returns [B, 1] float32 (same as the PyTorch module).
    NOTE: if this net is evaluated per-state in an RL loop, batch many states
    per call — at tiny B the kernel is pure launch overhead.
    """
    w1, w23, w4, bias = packed["w1"], packed["w23"], packed["w4"], packed["bias"]
    B, state_dim = x.shape
    P = w1.shape[1]

    # Cast the input to the weight dtype on the wrapper side: halves input
    # DMA bytes when weights are bf16 (no-op for the f32-weight path).
    if x.dtype != w1.dtype:
        x = x.astype(w1.dtype)

    # Batch tile: multiple of 8 sublanes, at least 2 grid steps when possible
    # so ("parallel",) keeps both v7x TensorCores busy. No batch padding —
    # Pallas masks the edge block (math is row-independent, writes are masked).
    tb = min(tile_b, _round_up(pl.cdiv(B, 2), 8))
    grid = (pl.cdiv(B, tb),)

    flops = 2 * B * (state_dim * P + 2 * P * P + P)
    bytes_accessed = (
        x.size * x.dtype.itemsize + B * 4
        + w1.size * w1.dtype.itemsize + w23.size * w23.dtype.itemsize
        + w4.size * 4 + bias.size * 4)

    out = pl.pallas_call(
        _value_net_kernel,
        out_shape=jax.ShapeDtypeStruct((B, 1), jnp.float32),
        grid_spec=pltpu.PrefetchScalarGridSpec(
            num_scalar_prefetch=0,
            grid=grid,
            in_specs=[
                pl.BlockSpec((tb, state_dim), lambda i: (i, 0)),   # x: tiled
                pl.BlockSpec((state_dim, P), lambda i: (0, 0)),    # w1: resident
                pl.BlockSpec((2, P, P), lambda i: (0, 0, 0)),      # w2/w3
                pl.BlockSpec((1, P), lambda i: (0, 0)),            # w4 row
                pl.BlockSpec((4, P), lambda i: (0, 0)),            # biases
            ],
            out_specs=pl.BlockSpec((tb, 1), lambda i: (i, 0)),     # lane-narrow but tiny
        ),
        compiler_params=pltpu.CompilerParams(
            dimension_semantics=("parallel",)),
        cost_estimate=pl.CostEstimate(
            flops=flops, transcendentals=0, bytes_accessed=bytes_accessed),
    )(x, w1, w23, w4, bias)

    return out


# --------------------------------------------------------------------------
# Init (mirrors torch defaults / orthogonal option) + pure-JAX reference
# --------------------------------------------------------------------------
def _orthogonal(key, shape, dtype=jnp.float32):
    rows, cols = shape
    n = max(rows, cols)
    a = jax.random.normal(key, (n, n), dtype=jnp.float32)
    q, r = jnp.linalg.qr(a)
    d = jnp.diag(r)
    q = q * jnp.where(d == 0, 1.0, jnp.sign(d))[None, :]
    return q[:rows, :cols].astype(dtype)


def init_value_net_params(key, state_dim, hidden_dim, init_ort=True):
    keys = jax.random.split(key, 8)

    def unif(k, shape, fan_in):
        bound = 1.0 / jnp.sqrt(jnp.asarray(fan_in, jnp.float32))
        return jax.random.uniform(k, shape, jnp.float32, -bound, bound)

    params = {
        "fc1_w": unif(keys[0], (hidden_dim, state_dim), state_dim),
        "fc1_b": unif(keys[1], (hidden_dim,), state_dim),
        "fc2_w": unif(keys[2], (hidden_dim, hidden_dim), hidden_dim),
        "fc2_b": unif(keys[3], (hidden_dim,), hidden_dim),
        "fc3_w": unif(keys[4], (hidden_dim, hidden_dim), hidden_dim),
        "fc3_b": unif(keys[5], (hidden_dim,), hidden_dim),
        "fc4_w": unif(keys[6], (1, hidden_dim), hidden_dim),
        "fc4_b": unif(keys[7], (1,), hidden_dim),
    }
    if init_ort:  # torch code applies orthogonal_ to fc1, fc3, fc4 only
        params["fc1_w"] = _orthogonal(keys[0], (hidden_dim, state_dim))
        params["fc3_w"] = _orthogonal(keys[4], (hidden_dim, hidden_dim))
        params["fc4_w"] = _orthogonal(keys[6], (1, hidden_dim))
    return params


def _reference_forward(x, params):
    h = jax.nn.relu(x @ params["fc1_w"].T + params["fc1_b"])
    h = jax.nn.relu(h @ params["fc2_w"].T + params["fc2_b"])
    h = jax.nn.relu(h @ params["fc3_w"].T + params["fc3_b"])
    return h @ params["fc4_w"].T + params["fc4_b"]


# --------------------------------------------------------------------------
if __name__ == "__main__":
    state_dim, hidden_dim = 16, 32
    batch = 32

    key = jax.random.PRNGKey(0)
    k_params, k_x = jax.random.split(key)
    params = init_value_net_params(k_params, state_dim, hidden_dim, init_ort=True)
    x = jax.random.normal(k_x, (batch, state_dim), dtype=jnp.float32)

    ref = _reference_forward(x, params)

    # float32 weights: exact match with reference.
    packed_f32 = prepare_value_net_params(params, dtype=jnp.float32)
    out = jax.block_until_ready(value_net_forward(x, packed_f32))
    assert out.shape == (batch, 1)
    assert jnp.allclose(out, ref, atol=1e-4, rtol=1e-4)

    # Ragged batch exercises the masked edge-block path (no wrapper padding).
    out_ragged = jax.block_until_ready(value_net_forward(x[:13], packed_f32))
    assert out_ragged.shape == (13, 1)
    assert jnp.allclose(out_ragged, ref[:13], atol=1e-4, rtol=1e-4)

    # bfloat16 weights/activations (default; f32 accumulation): MXU-native path.
    packed_bf16 = prepare_value_net_params(params)
    out_bf16 = jax.block_until_ready(value_net_forward(x, packed_bf16))
    assert out_bf16.shape == (batch, 1)
    assert jnp.allclose(out_bf16, ref, atol=1e-1, rtol=1e-1)

    print("KERNEL_OK")
</pallas_src>

<mosaic_0001>
module attributes {stable_mosaic.version = 11 : i64} {
  func.func @_value_net_kernel(%arg0: i32, %arg1: memref<16x16xf32, #tpu.memory_space<vmem>>, %arg2: memref<16x128xf32, #tpu.memory_space<vmem>>, %arg3: memref<2x128x128xf32, #tpu.memory_space<vmem>>, %arg4: memref<1x128xf32, #tpu.memory_space<vmem>>, %arg5: memref<4x128xf32, #tpu.memory_space<vmem>>, %arg6: memref<16x1xf32, #tpu.memory_space<vmem>>) attributes {dimension_semantics = [#tpu.dimension_semantics<parallel>], iteration_bounds = array<i64: 2>, scalar_prefetch = 0 : i64, scratch_operands = 0 : i64, tpu.core_type = #tpu.core_type<tc>, window_params = [{transform_indices = @transform_0, window_bounds = array<i64: 16, 16>}, {pipeline_mode = #tpu.pipeline_mode<synchronous>, transform_indices = @transform_1, window_bounds = array<i64: 16, 128>}, {pipeline_mode = #tpu.pipeline_mode<synchronous>, transform_indices = @transform_2, window_bounds = array<i64: 2, 128, 128>}, {pipeline_mode = #tpu.pipeline_mode<synchronous>, transform_indices = @transform_3, window_bounds = array<i64: 1, 128>}, {pipeline_mode = #tpu.pipeline_mode<synchronous>, transform_indices = @transform_4, window_bounds = array<i64: 4, 128>}, {transform_indices = @transform_5, window_bounds = array<i64: 16, 1>}]} {
    %c0 = arith.constant 0 : index
    %c0_0 = arith.constant 0 : index
    %0 = vector.load %arg1[%c0, %c0_0] : memref<16x16xf32, #tpu.memory_space<vmem>>, vector<16x16xf32>
    %c0_1 = arith.constant 0 : index
    %c0_2 = arith.constant 0 : index
    %1 = vector.load %arg2[%c0_1, %c0_2] : memref<16x128xf32, #tpu.memory_space<vmem>>, vector<16x128xf32>
    %cst = arith.constant dense<0.000000e+00> : vector<16x128xf32>
    %2 = tpu.matmul %0, %1, %cst {dimension_numbers = #tpu.dot_dimension_numbers<[1], [0], [0], [1], [0, 0, 1, 1], [], []>} : vector<16x16xf32>, vector<16x128xf32>, vector<16x128xf32> -> vector<16x128xf32>
    %c0_3 = arith.constant 0 : index
    %c0_4 = arith.constant 0 : index
    %3 = vector.load %arg5[%c0_3, %c0_4] : memref<4x128xf32, #tpu.memory_space<vmem>>, vector<1x128xf32>
    %4 = vector.broadcast %3 : vector<1x128xf32> to vector<16x128xf32>
    %5 = arith.addf %2, %4 : vector<16x128xf32>
    %cst_5 = arith.constant 0.000000e+00 : f32
    %6 = vector.broadcast %cst_5 : f32 to vector<16x128xf32>
    %7 = arith.maximumf %5, %6 : vector<16x128xf32>
    %c0_6 = arith.constant 0 : index
    %c0_7 = arith.constant 0 : index
    %c0_8 = arith.constant 0 : index
    %8 = vector.load %arg3[%c0_6, %c0_7, %c0_8] : memref<2x128x128xf32, #tpu.memory_space<vmem>>, vector<1x128x128xf32>
    %9 = vector.shape_cast %8 : vector<1x128x128xf32> to vector<128x128xf32>
    %cst_9 = arith.constant dense<0.000000e+00> : vector<16x128xf32>
    %10 = tpu.matmul %7, %9, %cst_9 {dimension_numbers = #tpu.dot_dimension_numbers<[1], [0], [0], [1], [0, 0, 1, 1], [], []>} : vector<16x128xf32>, vector<128x128xf32>, vector<16x128xf32> -> vector<16x128xf32>
    %c1 = arith.constant 1 : index
    %c0_10 = arith.constant 0 : index
    %11 = vector.load %arg5[%c1, %c0_10] : memref<4x128xf32, #tpu.memory_space<vmem>>, vector<1x128xf32>
    %12 = vector.broadcast %11 : vector<1x128xf32> to vector<16x128xf32>
    %13 = arith.addf %10, %12 : vector<16x128xf32>
    %cst_11 = arith.constant 0.000000e+00 : f32
    %14 = vector.broadcast %cst_11 : f32 to vector<16x128xf32>
    %15 = arith.maximumf %13, %14 : vector<16x128xf32>
    %c1_12 = arith.constant 1 : index
    %c0_13 = arith.constant 0 : index
    %c0_14 = arith.constant 0 : index
    %16 = vector.load %arg3[%c1_12, %c0_13, %c0_14] : memref<2x128x128xf32, #tpu.memory_space<vmem>>, vector<1x128x128xf32>
    %17 = vector.shape_cast %16 : vector<1x128x128xf32> to vector<128x128xf32>
    %cst_15 = arith.constant dense<0.000000e+00> : vector<16x128xf32>
    %18 = tpu.matmul %15, %17, %cst_15 {dimension_numbers = #tpu.dot_dimension_numbers<[1], [0], [0], [1], [0, 0, 1, 1], [], []>} : vector<16x128xf32>, vector<128x128xf32>, vector<16x128xf32> -> vector<16x128xf32>
    %c2 = arith.constant 2 : index
    %c0_16 = arith.constant 0 : index
    %19 = vector.load %arg5[%c2, %c0_16] : memref<4x128xf32, #tpu.memory_space<vmem>>, vector<1x128xf32>
    %20 = vector.broadcast %19 : vector<1x128xf32> to vector<16x128xf32>
    %21 = arith.addf %18, %20 : vector<16x128xf32>
    %cst_17 = arith.constant 0.000000e+00 : f32
    %22 = vector.broadcast %cst_17 : f32 to vector<16x128xf32>
    %23 = arith.maximumf %21, %22 : vector<16x128xf32>
    %c0_18 = arith.constant 0 : index
    %c0_19 = arith.constant 0 : index
    %24 = vector.load %arg4[%c0_18, %c0_19] : memref<1x128xf32, #tpu.memory_space<vmem>>, vector<1x128xf32>
    %25 = vector.broadcast %24 : vector<1x128xf32> to vector<16x128xf32>
    %26 = arith.mulf %23, %25 : vector<16x128xf32>
    %cst_20 = arith.constant dense<0.000000e+00> : vector<16xf32>
    %27 = vector.multi_reduction <add>, %26, %cst_20 [1] : vector<16x128xf32> to vector<16xf32>
    %28 = vector.shape_cast %27 : vector<16xf32> to vector<16x1xf32>
    %c3 = arith.constant 3 : index
    %c0_21 = arith.constant 0 : index
    %29 = vector.load %arg5[%c3, %c0_21] : memref<4x128xf32, #tpu.memory_space<vmem>>, vector<1x1xf32>
    %30 = vector.broadcast %29 : vector<1x1xf32> to vector<16x1xf32>
    %31 = arith.addf %28, %30 : vector<16x1xf32>
    %c0_22 = arith.constant 0 : index
    %c0_23 = arith.constant 0 : index
    %32 = vector.load %arg6[%c0_22, %c0_23] : memref<16x1xf32, #tpu.memory_space<vmem>>, vector<16x1xf32>
    tpu.vector_store %arg6[%c0_22, %c0_23], %31 {strides = array<i32>} : memref<16x1xf32, #tpu.memory_space<vmem>>, vector<16x1xf32>,
    return
  }
  func.func @transform_0(%arg0: i32) -> (i32, i32) {
    %c0_i32 = arith.constant 0 : i32
    %c0_i32_0 = arith.constant 0 : i32
    return %arg0, %c0_i32 : i32, i32
  }
  func.func @transform_1(%arg0: i32) -> (i32, i32) {
    %c0_i32 = arith.constant 0 : i32
    %c0_i32_0 = arith.constant 0 : i32
    %c0_i32_1 = arith.constant 0 : i32
    return %c0_i32, %c0_i32_0 : i32, i32
  }
  func.func @transform_2(%arg0: i32) -> (i32, i32, i32) {
    %c0_i32 = arith.constant 0 : i32
    %c0_i32_0 = arith.constant 0 : i32
    %c0_i32_1 = arith.constant 0 : i32
    %c0_i32_2 = arith.constant 0 : i32
    return %c0_i32, %c0_i32_0, %c0_i32_1 : i32, i32, i32
  }
  func.func @transform_3(%arg0: i32) -> (i32, i32) {
    %c0_i32 = arith.constant 0 : i32
    %c0_i32_0 = arith.constant 0 : i32
    %c0_i32_1 = arith.constant 0 : i32
    return %c0_i32, %c0_i32_0 : i32, i32
  }
  func.func @transform_4(%arg0: i32) -> (i32, i32) {
    %c0_i32 = arith.constant 0 : i32
    %c0_i32_0 = arith.constant 0 : i32
    %c0_i32_1 = arith.constant 0 : i32
    return %c0_i32, %c0_i32_0 : i32, i32
  }
  func.func @transform_5(%arg0: i32) -> (i32, i32) {
    %c0_i32 = arith.constant 0 : i32
    %c0_i32_0 = arith.constant 0 : i32
    return %arg0, %c0_i32 : i32, i32
  }
}

</mosaic_0001>

<llo_original>
// kernel: value_net_forward.1
$region0: #{value_net_forward.1}
  #allocation0 [shape = 'u32[]', space=smem, size = 0x4, offset = 0x4, fixed_abs, tag = 'smem constant byte address 0x4 - core index']
  #allocation1 [shape = 'u32[144,128]{1,0:T(1,128)}', space=vmem, size = 0x12000, scoped, tag = 'internal scratch']
  %s0 = inlined_call_operand.vmem [shape: f32[32,16], index: 0, kind: input, shape index: {}]
  %s1 = inlined_call_operand.vmem [shape: f32[16,128], index: 1, kind: input, shape index: {}]
  %s2 = inlined_call_operand.hbm [shape: f32[2,128,128], index: 2, kind: input, shape index: {}]
  %s3 = inlined_call_operand.vmem [shape: f32[1,128], index: 3, kind: input, shape index: {}]
  %s4 = inlined_call_operand.vmem [shape: f32[4,128], index: 4, kind: input, shape index: {}]
  %s5 = inlined_call_operand.vmem [shape: f32[32,1], index: 5, kind: output, shape index: {}]
  %s6 = sld [smem:[#allocation0]]
  $region57: #{value_net_forward.1} parent=0
    _
  %s8 = ssub.s32 1, %s6
  %s9 = scalar_select 0, %s8, %s6
  $region1: #{value_net_forward.1} parent=0
    #allocation2 [shape = 'u8[131072]{0}', space=vmem, size = 0x20000, scoped, tag = 'input window, operand 2, single buffered']
    #allocation3 [shape = 's32[2]{0}', space=sflag, size = 0x8, scoped, tag = 'scoped memory for value_net_forward.1']
    %10 = vsyncpa [#allocation3], 0
    loop: start=0, step=1, limit=4
    $region2: #{value_net_forward.1} parent=1 // loop_pre_header
      _
    $region3: #{value_net_forward.1} parent=1 // loop_header
      %s12 = sphi 0, %s16
      %p13 = scmp.ge.s32.totalorder %s12, 4
      %s22 = sphi 0, %s24
      %s25 = sphi 0, %s22
      %s26 = sphi 0, %s25
      %s42 = sphi 0, %s26
      %s46 = sphi 0, %s46
      %s48 = sphi 0, %s46
      %s49 = sphi 0, %s48
      %s63 = sphi 0, %s49
      %s67 = sphi 0, %s67
      %s69 = sphi 0, %s67
      %s70 = sphi 0, %s69
      %s84 = sphi 0, %s70
      %s88 = sphi 0, %s88
      %s90 = sphi 0, %s88
      %s91 = sphi 0, %s90
      %s105 = sphi 0, %s91
      %s109 = sphi 0, %s109
      %s111 = sphi 0, %s109
      %s112 = sphi 0, %s111
      %s126 = sphi 0, %s112
      %s132 = sphi 0, %s134
      %s135 = sphi 0, %s132
      %s136 = sphi 0, %s135
      %s152 = sphi 0, %s136
    $region4: #{value_net_forward.1} parent=1 // loop_header_branch
      %15 = sbr.rel (%p13) target = $region8
    $region5: #{value_net_forward.1} parent=1 // loop_body
      %s17 = ssub.s32 %s12, 1
      %s18 = ssub.s32 %s12, 2
      %s19 = sadd.s32 %s12, 1
      %s20 = ssub.s32 %s12, %s19
      %p21 = scmp.eq.s32.totalorder %s20, 0
      %s23 = sadd.s32 %s22, 1
      %s24 = scalar_select %p21, %s22, %s23
      %p27 = pneg %p21
      %p28 = scmp.eq.s32.totalorder %s12, 1
      %p29 = por %p27, %p28
      %p30 = scmp.ne.s32.totalorder %s22, %s25
      %p31 = scmp.eq.s32.totalorder %s12, 0
      %p32 = por %p30, %p31
      %p33 = scmp.ne.s32.totalorder %s22, %s25
      %p34 = scmp.eq.s32.totalorder %s17, 1
      %p35 = por %p33, %p34
      %p36 = scmp.ne.s32.totalorder %s25, %s26
      %p37 = scmp.eq.s32.totalorder %s17, 0
      %p38 = por %p36, %p37
      %p39 = scmp.ne.s32.totalorder %s25, %s26
      %p40 = scmp.eq.s32.totalorder %s18, 1
      %p41 = por %p39, %p40
      %p43 = scmp.ne.s32.totalorder %s26, %s42
      %p44 = scmp.eq.s32.totalorder %s18, 0
      %p45 = por %p43, %p44
      %s47 = sadd.s32 %s46, 1
      %p50 = scmp.eq.s32.totalorder %s12, 1
      %p51 = scmp.ne.s32.totalorder %s46, %s48
      %p52 = scmp.eq.s32.totalorder %s12, 0
      %p53 = por %p51, %p52
      %p54 = scmp.ne.s32.totalorder %s46, %s48
      %p55 = scmp.eq.s32.totalorder %s17, 1
      %p56 = por %p54, %p55
      %p57 = scmp.ne.s32.totalorder %s48, %s49
      %p58 = scmp.eq.s32.totalorder %s17, 0
      %p59 = por %p57, %p58
      %p60 = scmp.ne.s32.totalorder %s48, %s49
      %p61 = scmp.eq.s32.totalorder %s18, 1
      %p62 = por %p60, %p61
      %p64 = scmp.ne.s32.totalorder %s49, %s63
      %p65 = scmp.eq.s32.totalorder %s18, 0
      %p66 = por %p64, %p65
      %s68 = sadd.s32 %s67, 1
      %p71 = scmp.eq.s32.totalorder %s12, 1
      %p72 = scmp.ne.s32.totalorder %s67, %s69
      %p73 = scmp.eq.s32.totalorder %s12, 0
      %p74 = por %p72, %p73
      %p75 = scmp.ne.s32.totalorder %s67, %s69
      %p76 = scmp.eq.s32.totalorder %s17, 1
      %p77 = por %p75, %p76
      %p78 = scmp.ne.s32.totalorder %s69, %s70
      %p79 = scmp.eq.s32.totalorder %s17, 0
      %p80 = por %p78, %p79
      %p81 = scmp.ne.s32.totalorder %s69, %s70
      %p82 = scmp.eq.s32.totalorder %s18, 1
      %p83 = por %p81, %p82
      %p85 = scmp.ne.s32.totalorder %s70, %s84
      %p86 = scmp.eq.s32.totalorder %s18, 0
      %p87 = por %p85, %p86
      %s89 = sadd.s32 %s88, 1
      %p92 = scmp.eq.s32.totalorder %s12, 1
      %p93 = scmp.ne.s32.totalorder %s88, %s90
      %p94 = scmp.eq.s32.totalorder %s12, 0
      %p95 = por %p93, %p94
      %p96 = scmp.ne.s32.totalorder %s88, %s90
      %p97 = scmp.eq.s32.totalorder %s17, 1
      %p98 = por %p96, %p97
      %p99 = scmp.ne.s32.totalorder %s90, %s91
      %p100 = scmp.eq.s32.totalorder %s17, 0
      %p101 = por %p99, %p100
      %p102 = scmp.ne.s32.totalorder %s90, %s91
      %p103 = scmp.eq.s32.totalorder %s18, 1
      %p104 = por %p102, %p103
      %p106 = scmp.ne.s32.totalorder %s91, %s105
      %p107 = scmp.eq.s32.totalorder %s18, 0
      %p108 = por %p106, %p107
      %s110 = sadd.s32 %s109, 1
      %p113 = scmp.eq.s32.totalorder %s12, 1
      %p114 = scmp.ne.s32.totalorder %s109, %s111
      %p115 = scmp.eq.s32.totalorder %s12, 0
      %p116 = por %p114, %p115
      %p117 = scmp.ne.s32.totalorder %s109, %s111
      %p118 = scmp.eq.s32.totalorder %s17, 1
      %p119 = por %p117, %p118
      %p120 = scmp.ne.s32.totalorder %s111, %s112
      %p121 = scmp.eq.s32.totalorder %s17, 0
      %p122 = por %p120, %p121
      %p123 = scmp.ne.s32.totalorder %s111, %s112
      %p124 = scmp.eq.s32.totalorder %s18, 1
      %p125 = por %p123, %p124
      %p127 = scmp.ne.s32.totalorder %s112, %s126
      %p128 = scmp.eq.s32.totalorder %s18, 0
      %p129 = por %p127, %p128
      %s130 = ssub.s32 %s12, %s19
      %p131 = scmp.eq.s32.totalorder %s130, 0
      %s133 = sadd.s32 %s132, 1
      %s134 = scalar_select %p131, %s132, %s133
      %p137 = pneg %p131
      %p138 = scmp.eq.s32.totalorder %s12, 1
      %p139 = por %p137, %p138
      %p140 = scmp.ne.s32.totalorder %s132, %s135
      %p141 = scmp.eq.s32.totalorder %s12, 0
      %p142 = por %p140, %p141
      %p143 = scmp.ne.s32.totalorder %s132, %s135
      %p144 = scmp.eq.s32.totalorder %s17, 1
      %p145 = por %p143, %p144
      %p146 = scmp.ne.s32.totalorder %s135, %s136
      %p147 = scmp.eq.s32.totalorder %s17, 0
      %p148 = por %p146, %p147
      %p149 = scmp.ne.s32.totalorder %s135, %s136
      %p150 = scmp.eq.s32.totalorder %s18, 1
      %p151 = por %p149, %p150
      %p153 = scmp.ne.s32.totalorder %s136, %s152
      %p154 = scmp.eq.s32.totalorder %s18, 0
      %p155 = por %p153, %p154
      %p156 = scmp.le.s32.totalorder 1, %s12
      %p157 = scmp.lt.s32.totalorder %s12, 3
      %p158 = pnand %p156, %p157
      %p159 = pneg %p158
      // Predicated region
      $region9: #{value_net_forward.1} parent=5 // pred_check
        _
      $region10: #{value_net_forward.1} parent=5 // pred_check_branch
        %161 = sbr.rel (%p158) target = $region12
      $region11: #{value_net_forward.1} parent=5 // pred_region
        %s162 = ssub.s32 %s12, 1
        // Predicated region
        $region13: #{value_net_forward.1} parent=11 // pred_check
          %p163 = pneg %p59
        $region14: #{value_net_forward.1} parent=11 // pred_check_branch
          %165 = sbr.rel (%p163) target = $region16
        $region15: #{value_net_forward.1} parent=11 // pred_region
          _
        $region16: #{value_net_forward.1} parent=11 // pred_fallthru
          _
        // Predicated region
        $region17: #{value_net_forward.1} parent=11 // pred_check
          %p166 = pneg %p80
        $region18: #{value_net_forward.1} parent=11 // pred_check_branch
          %168 = sbr.rel (%p166) target = $region20
        $region19: #{value_net_forward.1} parent=11 // pred_region
          %s170 = ssub.s32 4096, 4096
          %171 = vsyncadd [#allocation3], %s170
          %s172 = sshll.u32 [#allocation2], 4
          %s173 = int_to_ptr.vmem [resolvable:$true] %s172
          %178 = dma.hbm_to_vmem [thread:$0]  %s2, 4096, %s173, [#allocation3], 128, 128, 8
        $region20: #{value_net_forward.1} parent=11 // pred_fallthru
          _
        // Predicated region
        $region21: #{value_net_forward.1} parent=11 // pred_check
          %p179 = pneg %p101
        $region22: #{value_net_forward.1} parent=11 // pred_check_branch
          %181 = sbr.rel (%p179) target = $region24
        $region23: #{value_net_forward.1} parent=11 // pred_region
          _
        $region24: #{value_net_forward.1} parent=11 // pred_fallthru
          _
        // Predicated region
        $region25: #{value_net_forward.1} parent=11 // pred_check
          %p182 = pneg %p122
        $region26: #{value_net_forward.1} parent=11 // pred_check_branch
          %184 = sbr.rel (%p182) target = $region28
        $region27: #{value_net_forward.1} parent=11 // pred_region
          _
        $region28: #{value_net_forward.1} parent=11 // pred_fallthru
          _
      $region12: #{value_net_forward.1} parent=5 // pred_fallthru
        _
      %p185 = scmp.lt.s32.totalorder %s12, 2
      // Predicated region
      $region29: #{value_net_forward.1} parent=5 // pred_check
        %p186 = pneg %p185
      $region30: #{value_net_forward.1} parent=5 // pred_check_branch
        %188 = sbr.rel (%p186) target = $region32
      $region31: #{value_net_forward.1} parent=5 // pred_region
        // Predicated region
        $region33: #{value_net_forward.1} parent=31 // pred_check
          %p189 = pneg %p32
        $region34: #{value_net_forward.1} parent=31 // pred_check_branch
          %191 = sbr.rel (%p189) target = $region36
        $region35: #{value_net_forward.1} parent=31 // pred_region
          %s192 = smul.u32 2, %s12
          %p193 = scmp.lt.s32.totalorder %s192, 3
          %s194 = scalar_select %p193, %s192, 3
          %s195 = smul.addr %s194, 8
          %s196 = scalar_lea.vmem %s0, %s195
          %s197 = smul.u32 2, %s12
        $region36: #{value_net_forward.1} parent=31 // pred_fallthru
          _
      $region32: #{value_net_forward.1} parent=5 // pred_fallthru
        _
      %p198 = scmp.le.s32.totalorder 1, %s12
      %p199 = scmp.lt.s32.totalorder %s12, 3
      %p200 = pnand %p198, %p199
      %p201 = pneg %p200
      // Predicated region
      $region37: #{value_net_forward.1} parent=5 // pred_check
        _
      $region38: #{value_net_forward.1} parent=5 // pred_check_branch
        %203 = sbr.rel (%p200) target = $region40
      $region39: #{value_net_forward.1} parent=5 // pred_region
        %s204 = ssub.s32 %s12, 1
        // Predicated region
        $region41: #{value_net_forward.1} parent=39 // pred_check
          %p205 = pneg %p80
        $region42: #{value_net_forward.1} parent=39 // pred_check_branch
          %207 = sbr.rel (%p205) target = $region44
        $region43: #{value_net_forward.1} parent=39 // pred_region
          %208 = dma.done [#allocation3], 4096
        $region44: #{value_net_forward.1} parent=39 // pred_fallthru
          _
        %s209 = smul.u32 2, %s17
        %p210 = scmp.lt.s32.totalorder %s209, 3
        %s211 = scalar_select %p210, %s209, 3
        %s212 = smul.addr %s211, 8
        %s213 = scalar_lea.vmem %s0, %s212
        %p214 = pneg %p38
        %p215 = pneg %p35
        %p216 = pneg %p59
        %p217 = pneg %p56
        %p218 = pneg %p80
        %p219 = pneg %p77
        %p220 = pneg %p101
        %p221 = pneg %p98
        %p222 = pneg %p122
        %p223 = pneg %p119
        %p224 = pneg %p148
        %p225 = pneg %p145
        %s226 = smul.u32 2, %s17
        %p227 = scmp.lt.s32.totalorder %s226, 3
        %s228 = scalar_select %p227, %s226, 3
        %s229 = smul.addr %s228, 8
        %s230 = scalar_lea.vmem %s5, %s229
        %s231 = smul.u32 2, %s17
        %p232 = scmp.lt.s32.totalorder %s231, 3
        %s233 = scalar_select %p232, %s231, 3
        %s234 = smul.addr %s233, 8
        %s235 = scalar_lea.vmem %s0, %s234
        %s236 = smul.u32 2, %s17
        %s237 = smul.u32 2, %s17
        %p238 = scmp.lt.s32.totalorder %s237, 3
        %s239 = scalar_select %p238, %s237, 3
        %s240 = smul.addr %s239, 8
        %s241 = scalar_lea.vmem %s5, %s240
        %s242 = smul.u32 2, %s17
        %v243 = vld [vmem:[%s235] sm:$0xff]
        %v244 = vld [vmem:[%s235 + $0x8] sm:$0xff]
        %v245 = vld [vmem:[%s1] sm:$0xff]
        %v246 = vld [vmem:[%s1 + $0x8] sm:$0xff]
        %v247 = vld [vmem:[%s4] sm:$0x1]
        %v248 = vlaneseq
        %v249 = vshrl.u32 %v248, 7
        %v250 = vsub.s32 0, %v249
        %v251 = vrot.slane %v247, %v250
        %vm252 = vcmask 130048
        %v254 = vsel %vm252, %v243, 0
        %v257 = vsel %vm252, %v244, 0
        %259 = vmatprep.subr.mxu0 0.0
        %260 = vmatpush1.msra.mxu0 %v245
        %261 = vmatprep.subr.mxu0 0.0
        %262 = vmatpush1.msra.mxu0 %v246
        %263 = vmatprep.subr.mxu0 0.0
        %264 = vmatpush1.msra.mxu0 0.0
        %265 = vmatprep.subr.mxu0 0.0
        %266 = vmatpush1.msra.mxu0 0.0
        %267 = vmatprep.subr.mxu0 0.0
        %268 = vmatpush1.msra.mxu0 0.0
        %269 = vmatprep.subr.mxu0 0.0
        %270 = vmatpush1.msra.mxu0 0.0
        %271 = vmatprep.subr.mxu0 0.0
        %272 = vmatpush1.msra.mxu0 0.0
        %273 = vmatprep.subr.mxu0 0.0
        %274 = vmatpush1.msra.mxu0 0.0
        %275 = vmatprep.subr.mxu0 0.0
        %276 = vmatpush1.msra.mxu0 0.0
        %277 = vmatprep.subr.mxu0 0.0
        %278 = vmatpush1.msra.mxu0 0.0
        %279 = vmatprep.subr.mxu0 0.0
        %280 = vmatpush1.msra.mxu0 0.0
        %281 = vmatprep.subr.mxu0 0.0
        %282 = vmatpush1.msra.mxu0 0.0
        %283 = vmatprep.subr.mxu0 0.0
        %284 = vmatpush1.msra.mxu0 0.0
        %285 = vmatprep.subr.mxu0 0.0
        %286 = vmatpush1.msra.mxu0 0.0
        %287 = vmatprep.subr.mxu0 0.0
        %288 = vmatpush1.msra.mxu0 0.0
        %289 = vmatprep.subr.mxu0 0.0
        %290 = vmatpush1.msra.mxu0 0.0
        %291 = vmatprep.subr.mxu0 0.0
        %292 = vmatpush1.msra.mxu0 0.0
        %293 = vmatprep.subr.mxu0 0.0
        %294 = vmatpush1.msra.mxu0 0.0
        %295 = vmatprep.subr.mxu0 0.0
        %296 = vmatpush1.msra.mxu0 0.0
        %297 = vmatprep.subr.mxu0 0.0
        %298 = vmatpush1.msra.mxu0 0.0
        %299 = vmatprep.subr.mxu0 0.0
        %300 = vmatpush1.msra.mxu0 0.0
        %301 = vmatprep.subr.mxu0 0.0
        %302 = vmatpush1.msra.mxu0 0.0
        %303 = vmatprep.subr.mxu0 0.0
        %304 = vmatpush1.msra.mxu0 0.0
        %305 = vmatprep.subr.mxu0 0.0
        %306 = vmatpush1.msra.mxu0 0.0
        %307 = vmatprep.subr.mxu0 0.0
        %308 = vmatpush1.msra.mxu0 0.0
        %309 = vmatprep.subr.mxu0 0.0
        %310 = vmatpush1.msra.mxu0 0.0
        %311 = vmatprep.subr.mxu0 0.0
        %312 = vmatpush1.msra.mxu0 0.0
        %313 = vmatprep.subr.mxu0 0.0
        %314 = vmatpush1.msra.mxu0 0.0
        %315 = vmatprep.subr.mxu0 0.0
        %316 = vmatpush1.msra.mxu0 0.0
        %317 = vmatprep.subr.mxu0 0.0
        %318 = vmatpush1.msra.mxu0 0.0
        %319 = vmatprep.subr.mxu0 0.0
        %320 = vmatpush1.msra.mxu0 0.0
        %321 = vmatprep.subr.mxu0 0.0
        %322 = vmatpush1.msra.mxu0 0.0
        %323 = vmatprep.mubr.f32.mxu0 0.0
        %324 = vmatmul.mubr.f32.gmra.mrb[0].mxu0 %v254
        %v325 = vpop.f32.mrb[0].mxu0
        %v326 = vadd.f32 %v251, %v325
        %v327 = vpop.f32.mrb[0].mxu0
        %328 = vmatprep.mubr.f32.mxu0 0.0
        %329 = vmatmul.mubr.f32.gmra.mrb[0].mxu0 %v257
        %v330 = vpop.f32.mrb[0].mxu0
        %v331 = vadd.f32 %v251, %v330
        %v332 = vpop.f32.mrb[0].mxu0
        %333 = vdwg.mxu0
        %v334 = vmax.f32 %v326, 0.0
        %v335 = vmax.f32 %v331, 0.0
        %v336 = vld [vmem:[#allocation2] sm:$0xff]
        %v337 = vld [vmem:[#allocation2 + $0x8] sm:$0xff]
        %v338 = vld [vmem:[#allocation2 + $0x10] sm:$0xff]
        %v339 = vld [vmem:[#allocation2 + $0x18] sm:$0xff]
        %v340 = vld [vmem:[#allocation2 + $0x20] sm:$0xff]
        %v341 = vld [vmem:[#allocation2 + $0x28] sm:$0xff]
        %v342 = vld [vmem:[#allocation2 + $0x30] sm:$0xff]
        %v343 = vld [vmem:[#allocation2 + $0x38] sm:$0xff]
        %v344 = vld [vmem:[#allocation2 + $0x40] sm:$0xff]
        %v345 = vld [vmem:[#allocation2 + $0x48] sm:$0xff]
        %v346 = vld [vmem:[#allocation2 + $0x50] sm:$0xff]
        %v347 = vld [vmem:[#allocation2 + $0x58] sm:$0xff]
        %v348 = vld [vmem:[#allocation2 + $0x60] sm:$0xff]
        %v349 = vld [vmem:[#allocation2 + $0x68] sm:$0xff]
        %v350 = vld [vmem:[#allocation2 + $0x70] sm:$0xff]
        %v351 = vld [vmem:[#allocation2 + $0x78] sm:$0xff]
        %v352 = vld [vmem:[%s4 + $0x1] sm:$0x1]
        %v353 = vlaneseq
        %v354 = vshrl.u32 %v353, 7
        %v355 = vsub.s32 0, %v354
        %v356 = vrot.slane %v352, %v355
        %357 = vmatprep.subr.mxu0 0.0
        %358 = vmatpush1.msra.mxu0 %v336
        %359 = vmatprep.subr.mxu0 0.0
        %360 = vmatpush1.msra.mxu0 %v337
        %361 = vmatprep.subr.mxu0 0.0
        %362 = vmatpush1.msra.mxu0 %v338
        %363 = vmatprep.subr.mxu0 0.0
        %364 = vmatpush1.msra.mxu0 %v339
        %365 = vmatprep.subr.mxu0 0.0
        %366 = vmatpush1.msra.mxu0 %v340
        %367 = vmatprep.subr.mxu0 0.0
        %368 = vmatpush1.msra.mxu0 %v341
        %369 = vmatprep.subr.mxu0 0.0
        %370 = vmatpush1.msra.mxu0 %v342
        %371 = vmatprep.subr.mxu0 0.0
        %372 = vmatpush1.msra.mxu0 %v343
        %373 = vmatprep.subr.mxu0 0.0
        %374 = vmatpush1.msra.mxu0 %v344
        %375 = vmatprep.subr.mxu0 0.0
        %376 = vmatpush1.msra.mxu0 %v345
        %377 = vmatprep.subr.mxu0 0.0
        %378 = vmatpush1.msra.mxu0 %v346
        %379 = vmatprep.subr.mxu0 0.0
        %380 = vmatpush1.msra.mxu0 %v347
        %381 = vmatprep.subr.mxu0 0.0
        %382 = vmatpush1.msra.mxu0 %v348
        %383 = vmatprep.subr.mxu0 0.0
        %384 = vmatpush1.msra.mxu0 %v349
        %385 = vmatprep.subr.mxu0 0.0
        %386 = vmatpush1.msra.mxu0 %v350
        %387 = vmatprep.subr.mxu0 0.0
        %388 = vmatpush1.msra.mxu0 %v351
        %389 = vmatprep.subr.mxu0 0.0
        %390 = vmatpush1.msra.mxu0 0.0
        %391 = vmatprep.subr.mxu0 0.0
        %392 = vmatpush1.msra.mxu0 0.0
        %393 = vmatprep.subr.mxu0 0.0
        %394 = vmatpush1.msra.mxu0 0.0
        %395 = vmatprep.subr.mxu0 0.0
        %396 = vmatpush1.msra.mxu0 0.0
        %397 = vmatprep.subr.mxu0 0.0
        %398 = vmatpush1.msra.mxu0 0.0
        %399 = vmatprep.subr.mxu0 0.0
        %400 = vmatpush1.msra.mxu0 0.0
        %401 = vmatprep.subr.mxu0 0.0
        %402 = vmatpush1.msra.mxu0 0.0
        %403 = vmatprep.subr.mxu0 0.0
        %404 = vmatpush1.msra.mxu0 0.0
        %405 = vmatprep.subr.mxu0 0.0
        %406 = vmatpush1.msra.mxu0 0.0
        %407 = vmatprep.subr.mxu0 0.0
        %408 = vmatpush1.msra.mxu0 0.0
        %409 = vmatprep.subr.mxu0 0.0
        %410 = vmatpush1.msra.mxu0 0.0
        %411 = vmatprep.subr.mxu0 0.0
        %412 = vmatpush1.msra.mxu0 0.0
        %413 = vmatprep.subr.mxu0 0.0
        %414 = vmatpush1.msra.mxu0 0.0
        %415 = vmatprep.subr.mxu0 0.0
        %416 = vmatpush1.msra.mxu0 0.0
        %417 = vmatprep.subr.mxu0 0.0
        %418 = vmatpush1.msra.mxu0 0.0
        %419 = vmatprep.subr.mxu0 0.0
        %420 = vmatpush1.msra.mxu0 0.0
        %421 = vmatprep.mubr.f32.mxu0 0.0
        %422 = vmatmul.mubr.f32.gmra.mrb[0].mxu0 %v334
        %v423 = vpop.f32.mrb[0].mxu0
        %v424 = vadd.f32 %v356, %v423
        %v425 = vpop.f32.mrb[0].mxu0
        %426 = vmatprep.mubr.f32.mxu0 0.0
        %427 = vmatmul.mubr.f32.gmra.mrb[0].mxu0 %v335
        %v428 = vpop.f32.mrb[0].mxu0
        %v429 = vadd.f32 %v356, %v428
        %v430 = vpop.f32.mrb[0].mxu0
        %431 = vdwg.mxu0
        %v432 = vmax.f32 %v424, 0.0
        %v433 = vmax.f32 %v429, 0.0
        %s434 = scalar_lea.vmem [#allocation2], 128
        %v435 = vld [vmem:[%s434] sm:$0xff]
        %v436 = vld [vmem:[%s434 + $0x8] sm:$0xff]
        %v437 = vld [vmem:[%s434 + $0x10] sm:$0xff]
        %v438 = vld [vmem:[%s434 + $0x18] sm:$0xff]
        %v439 = vld [vmem:[%s434 + $0x20] sm:$0xff]
        %v440 = vld [vmem:[%s434 + $0x28] sm:$0xff]
        %v441 = vld [vmem:[%s434 + $0x30] sm:$0xff]
        %v442 = vld [vmem:[%s434 + $0x38] sm:$0xff]
        %v443 = vld [vmem:[%s434 + $0x40] sm:$0xff]
        %v444 = vld [vmem:[%s434 + $0x48] sm:$0xff]
        %v445 = vld [vmem:[%s434 + $0x50] sm:$0xff]
        %v446 = vld [vmem:[%s434 + $0x58] sm:$0xff]
        %v447 = vld [vmem:[%s434 + $0x60] sm:$0xff]
        %v448 = vld [vmem:[%s434 + $0x68] sm:$0xff]
        %v449 = vld [vmem:[%s434 + $0x70] sm:$0xff]
        %v450 = vld [vmem:[%s434 + $0x78] sm:$0xff]
        %v451 = vld [vmem:[%s4 + $0x2] sm:$0x1]
        %v452 = vlaneseq
        %v453 = vshrl.u32 %v452, 7
        %v454 = vsub.s32 0, %v453
        %v455 = vrot.slane %v451, %v454
        %456 = vmatprep.subr.mxu0 0.0
        %457 = vmatpush1.msra.mxu0 %v435
        %458 = vmatprep.subr.mxu0 0.0
        %459 = vmatpush1.msra.mxu0 %v436
        %460 = vmatprep.subr.mxu0 0.0
        %461 = vmatpush1.msra.mxu0 %v437
        %462 = vmatprep.subr.mxu0 0.0
        %463 = vmatpush1.msra.mxu0 %v438
        %464 = vmatprep.subr.mxu0 0.0
        %465 = vmatpush1.msra.mxu0 %v439
        %466 = vmatprep.subr.mxu0 0.0
        %467 = vmatpush1.msra.mxu0 %v440
        %468 = vmatprep.subr.mxu0 0.0
        %469 = vmatpush1.msra.mxu0 %v441
        %470 = vmatprep.subr.mxu0 0.0
        %471 = vmatpush1.msra.mxu0 %v442
        %472 = vmatprep.subr.mxu0 0.0
        %473 = vmatpush1.msra.mxu0 %v443
        %474 = vmatprep.subr.mxu0 0.0
        %475 = vmatpush1.msra.mxu0 %v444
        %476 = vmatprep.subr.mxu0 0.0
        %477 = vmatpush1.msra.mxu0 %v445
        %478 = vmatprep.subr.mxu0 0.0
        %479 = vmatpush1.msra.mxu0 %v446
        %480 = vmatprep.subr.mxu0 0.0
        %481 = vmatpush1.msra.mxu0 %v447
        %482 = vmatprep.subr.mxu0 0.0
        %483 = vmatpush1.msra.mxu0 %v448
        %484 = vmatprep.subr.mxu0 0.0
        %485 = vmatpush1.msra.mxu0 %v449
        %486 = vmatprep.subr.mxu0 0.0
        %487 = vmatpush1.msra.mxu0 %v450
        %488 = vmatprep.subr.mxu0 0.0
        %489 = vmatpush1.msra.mxu0 0.0
        %490 = vmatprep.subr.mxu0 0.0
        %491 = vmatpush1.msra.mxu0 0.0
        %492 = vmatprep.subr.mxu0 0.0
        %493 = vmatpush1.msra.mxu0 0.0
        %494 = vmatprep.subr.mxu0 0.0
        %495 = vmatpush1.msra.mxu0 0.0
        %496 = vmatprep.subr.mxu0 0.0
        %497 = vmatpush1.msra.mxu0 0.0
        %498 = vmatprep.subr.mxu0 0.0
        %499 = vmatpush1.msra.mxu0 0.0
        %500 = vmatprep.subr.mxu0 0.0
        %501 = vmatpush1.msra.mxu0 0.0
        %502 = vmatprep.subr.mxu0 0.0
        %503 = vmatpush1.msra.mxu0 0.0
        %504 = vmatprep.subr.mxu0 0.0
        %505 = vmatpush1.msra.mxu0 0.0
        %506 = vmatprep.subr.mxu0 0.0
        %507 = vmatpush1.msra.mxu0 0.0
        %508 = vmatprep.subr.mxu0 0.0
        %509 = vmatpush1.msra.mxu0 0.0
        %510 = vmatprep.subr.mxu0 0.0
        %511 = vmatpush1.msra.mxu0 0.0
        %512 = vmatprep.subr.mxu0 0.0
        %513 = vmatpush1.msra.mxu0 0.0
        %514 = vmatprep.subr.mxu0 0.0
        %515 = vmatpush1.msra.mxu0 0.0
        %516 = vmatprep.subr.mxu0 0.0
        %517 = vmatpush1.msra.mxu0 0.0
        %518 = vmatprep.subr.mxu0 0.0
        %519 = vmatpush1.msra.mxu0 0.0
        %520 = vmatprep.mubr.f32.mxu0 0.0
        %521 = vmatmul.mubr.f32.gmra.mrb[0].mxu0 %v432
        %v522 = vpop.f32.mrb[0].mxu0
        %v523 = vadd.f32 %v455, %v522
        %v524 = vpop.f32.mrb[0].mxu0
        %525 = vmatprep.mubr.f32.mxu0 0.0
        %526 = vmatmul.mubr.f32.gmra.mrb[0].mxu0 %v433
        %v527 = vpop.f32.mrb[0].mxu0
        %v528 = vadd.f32 %v455, %v527
        %v529 = vpop.f32.mrb[0].mxu0
        %530 = vdwg.mxu0
        %v531 = vmax.f32 %v523, 0.0
        %v532 = vmax.f32 %v528, 0.0
        %v533 = vld [vmem:[%s3] sm:$0x1]
        %v535 = vlaneseq
        %v536 = vshrl.u32 %v535, 7
        %v537 = vsub.s32 0, %v536
        %v538 = vrot.slane %v533, %v537
        %v540 = vmul.f32 %v531, %v538
        %v541 = vmul.f32 %v532, %v538
        %542 = vadd.xlane.f32.xlu0 %v540
        %v543 = vpop.xlane.xlu0 %542
        %544 = vadd.xlane.f32.xlu0 %v541
        %v545 = vpop.xlane.xlu0 %544
        %v546 = vld [vmem:[%s4 + $0x3] sm:$0x1]
        %v547 = vlaneseq
        %v548 = vshrl.u32 %v547, 7
        %v549 = vsub.s32 0, %v548
        %v550 = vrot.slane %v546, %v549
        %v551 = vadd.f32 %v543, %v550
        %v552 = vadd.f32 %v545, %v550
        %vm553 = vcmask 7168
        %554 = vst.msk [vmem:[%s241] sm:$0xff] %vm553, %v551
        %555 = vst.msk [vmem:[%s241 + $0x8] sm:$0xff] %vm553, %v552
        %s556 = smul.u32 2, %s17
        %p557 = scmp.lt.s32.totalorder %s556, 3
        %s558 = scalar_select %p557, %s556, 3
        %s559 = smul.addr %s558, 8
        %s560 = scalar_lea.vmem %s5, %s559
        // Predicated region
        $region45: #{value_net_forward.1} parent=39 // pred_check
          %p561 = pneg %p145
        $region46: #{value_net_forward.1} parent=39 // pred_check_branch
          %563 = sbr.rel (%p561) target = $region48
        $region47: #{value_net_forward.1} parent=39 // pred_region
          %s564 = smul.u32 2, %s17
        $region48: #{value_net_forward.1} parent=39 // pred_fallthru
          _
      $region40: #{value_net_forward.1} parent=5 // pred_fallthru
        _
      %p565 = scmp.le.s32.totalorder 2, %s12
      // Predicated region
      $region49: #{value_net_forward.1} parent=5 // pred_check
        %p566 = pneg %p565
      $region50: #{value_net_forward.1} parent=5 // pred_check_branch
        %568 = sbr.rel (%p566) target = $region52
      $region51: #{value_net_forward.1} parent=5 // pred_region
        %s569 = ssub.s32 %s12, 2
        // Predicated region
        $region53: #{value_net_forward.1} parent=51 // pred_check
          %p570 = pneg %p151
        $region54: #{value_net_forward.1} parent=51 // pred_check_branch
          %572 = sbr.rel (%p570) target = $region56
        $region55: #{value_net_forward.1} parent=51 // pred_region
          %s573 = smul.u32 2, %s18
          %p574 = scmp.lt.s32.totalorder %s573, 3
          %s575 = scalar_select %p574, %s573, 3
          %s576 = smul.addr %s575, 8
          %s577 = scalar_lea.vmem %s5, %s576
        $region56: #{value_net_forward.1} parent=51 // pred_fallthru
          _
      $region52: #{value_net_forward.1} parent=5 // pred_fallthru
        _
    $region6: #{value_net_forward.1} parent=1 // loop_footer
      %s16 = sadd.s32 1, %s12
    $region7: #{value_net_forward.1} parent=1 // loop_footer_branch
      %11 = sbr.rel target = $region3
    $region8: #{value_net_forward.1} parent=1 // loop_exit
      _
    %578 = vsyncpa [#allocation3], 1
    %s579 = scalar_lea.sflag [#allocation3], 1
    %580 = vsyncpa %s579, 1

</llo_original>
